<compile_context>
chip_gen: v6e
topology: v6e:2x2x1
jax: 0.10.0
libtpu: 0.0.40
codegen_flags: <defaults>
</compile_context>

<pallas_src>
import functools

import jax
import jax.numpy as jnp
from jax.experimental import pallas as pl
from jax.experimental.pallas import tpu as pltpu


def _round_up(x, m):
    return ((x + m - 1) // m) * m


# --------------------------------------------------------------------------
# Kernel 1: serial recurrence over a chunk of T_BLK timesteps.
# --------------------------------------------------------------------------
def rnn_recurrent_kernel(xproj_ref, h0_ref, whh_ref, hseq_ref, hfinal_ref,
                         *, t_blk, seq_len):
    c = pl.program_id(0)

    # Seed the hidden carry. hfinal_ref has a constant index_map, so it stays
    # resident in VMEM across the whole (serial) grid and doubles as the carry;
    # it is written back to HBM only once, at the end of the call.
    @pl.when(c == 0)
    def _():
        hfinal_ref[...] = h0_ref[...]

    whh = whh_ref[...]                       # loaded once per chunk, VMEM-resident
    ragged = (seq_len % t_blk) != 0          # static: mask only if T was padded

    def step(s, h):
        # Recurrent matmul only (i2h + both biases were folded into xproj).
        pre = xproj_ref[s] + jnp.dot(h.astype(whh.dtype), whh,
                                     preferred_element_type=jnp.float32)
        h_new = jnp.tanh(pre)                # padded hidden lanes / batch rows stay 0
        hseq_ref[s] = h_new                  # per-step hidden for the parallel head
        if ragged:
            # Zero-padded trailing timesteps must not corrupt the final hidden.
            h_new = jnp.where(c * t_blk + s < seq_len, h_new, h)
        return h_new

    h = jax.lax.fori_loop(0, t_blk, step, hfinal_ref[...], unroll=True)
    hfinal_ref[...] = h                      # carry update: once per chunk


# --------------------------------------------------------------------------
# Kernel 2: parallel output head (h2o + log_softmax) over the whole sequence.
# --------------------------------------------------------------------------
def rnn_head_kernel(h_ref, who_ref, bo_ref, out_ref):
    logits = jnp.dot(h_ref[...].astype(who_ref.dtype), who_ref[...],
                     preferred_element_type=jnp.float32) + bo_ref[...]
    # Pad classes carry bias -1e30 (f32), so they never affect max / sum-exp.
    m = jnp.max(logits, axis=1, keepdims=True)
    shifted = logits - m
    lse = jnp.log(jnp.sum(jnp.exp(shifted), axis=1, keepdims=True))
    out_ref[...] = shifted - lse


def rnn_forward(x_seq, hidden0, params, *, t_blk=8, weights_dtype=jnp.float32):
    """Run the RNN over a whole sequence.

    x_seq:   (B, T, input_size) float32
    hidden0: (B, hidden_size)   float32
    Returns (log_probs: (B, T, output_size), final_hidden: (B, hidden_size)).
    """
    w_i2h, b_i2h, w_h2h, b_h2h, w_h2o, b_h2o = params
    B, T, input_size = x_seq.shape
    hidden_size = hidden0.shape[1]
    output_size = w_h2o.shape[0]
    f32 = jnp.float32

    B_PAD = _round_up(B, 8)
    HID_PAD = _round_up(hidden_size, 128)
    OUT_PAD = _round_up(output_size, 128)

    t_blk = max(1, min(t_blk, T))
    T_PAD = _round_up(T, t_blk)
    n_chunks = T_PAD // t_blk

    # ---- 1. Hoisted, non-recurrent input projection (one big MXU matmul). ----
    # Consumes x at its true feature width (no lane padding of x) and folds
    # both biases, so the serial kernel has no bias adds at all.
    xproj = (jnp.einsum('bti,hi->bth', x_seq.astype(f32), w_i2h.astype(f32))
             + (b_i2h + b_h2h).astype(f32))                      # (B, T, hidden)
    xproj = jnp.transpose(xproj, (1, 0, 2))                      # time-major
    xproj_pad = jnp.zeros((T_PAD, B_PAD, HID_PAD), f32)
    xproj_pad = xproj_pad.at[:T, :B, :hidden_size].set(xproj)    # pads are 0 -> pad
                                                                 # rows/lanes of h stay 0

    h0_pad = jnp.zeros((B_PAD, HID_PAD), f32).at[:B, :hidden_size].set(
        hidden0.astype(f32))

    w_hh = jnp.zeros((HID_PAD, HID_PAD), f32).at[:hidden_size, :hidden_size].set(
        w_h2h.T.astype(f32)).astype(weights_dtype)

    # ---- 2. Serial recurrent kernel (time chunked, weights resident). ----
    rec_kernel = functools.partial(rnn_recurrent_kernel, t_blk=t_blk, seq_len=T)
    h_seq_pad, h_final_pad = pl.pallas_call(
        rec_kernel,
        out_shape=(jax.ShapeDtypeStruct((T_PAD, B_PAD, HID_PAD), f32),
                   jax.ShapeDtypeStruct((B_PAD, HID_PAD), f32)),
        grid_spec=pltpu.PrefetchScalarGridSpec(
            num_scalar_prefetch=0,
            grid=(n_chunks,),
            in_specs=[
                pl.BlockSpec((t_blk, B_PAD, HID_PAD), lambda c: (c, 0, 0)),  # xproj chunk
                pl.BlockSpec((B_PAD, HID_PAD), lambda c: (0, 0)),            # h0
                pl.BlockSpec((HID_PAD, HID_PAD), lambda c: (0, 0)),          # W_h2h (resident)
            ],
            out_specs=[
                pl.BlockSpec((t_blk, B_PAD, HID_PAD), lambda c: (c, 0, 0)),  # h per step
                pl.BlockSpec((B_PAD, HID_PAD), lambda c: (0, 0)),            # final h (carry)
            ],
        ),
        compiler_params=pltpu.CompilerParams(
            dimension_semantics=("arbitrary",)),     # time is a serial carry
    )(xproj_pad, h0_pad, w_hh)

    # ---- 3. Parallel output head over the whole (T_PAD*B_PAD, HID) slab. ----
    w_ho = jnp.zeros((HID_PAD, OUT_PAD), f32).at[:hidden_size, :output_size].set(
        w_h2o.T.astype(f32)).astype(weights_dtype)
    b_o = jnp.full((1, OUT_PAD), -1e30, f32).at[0, :output_size].set(
        b_h2o.astype(f32))

    m_rows = T_PAD * B_PAD
    m_blk = t_blk * B_PAD                             # divides m_rows exactly
    h_flat = h_seq_pad.reshape(m_rows, HID_PAD)       # contiguous reshape (free)

    log_probs_pad = pl.pallas_call(
        rnn_head_kernel,
        out_shape=jax.ShapeDtypeStruct((m_rows, OUT_PAD), f32),
        grid_spec=pltpu.PrefetchScalarGridSpec(
            num_scalar_prefetch=0,
            grid=(n_chunks,),
            in_specs=[
                pl.BlockSpec((m_blk, HID_PAD), lambda i: (i, 0)),   # h rows
                pl.BlockSpec((HID_PAD, OUT_PAD), lambda i: (0, 0)), # W_h2o (resident)
                pl.BlockSpec((1, OUT_PAD), lambda i: (0, 0)),       # b (+ -1e30 pads)
            ],
            out_specs=pl.BlockSpec((m_blk, OUT_PAD), lambda i: (i, 0)),
        ),
        compiler_params=pltpu.CompilerParams(
            dimension_semantics=("parallel",)),       # head is embarrassingly parallel
    )(h_flat, w_ho, b_o)

    log_probs = log_probs_pad.reshape(T_PAD, B_PAD, OUT_PAD)[:T, :B, :output_size]
    log_probs = jnp.transpose(log_probs, (1, 0, 2))
    h_final = h_final_pad[:B, :hidden_size]
    return log_probs, h_final


def init_rnn_params(key, input_size, hidden_size, output_size):
    """Deterministic PyTorch-Linear-style init: U(-1/sqrt(fan_in), 1/sqrt(fan_in))."""
    keys = jax.random.split(key, 6)

    def linear(kw, kb, fan_in, fan_out):
        bound = 1.0 / jnp.sqrt(fan_in)
        w = jax.random.uniform(kw, (fan_out, fan_in), jnp.float32, -bound, bound)
        b = jax.random.uniform(kb, (fan_out,), jnp.float32, -bound, bound)
        return w, b

    w_i2h, b_i2h = linear(keys[0], keys[1], input_size, hidden_size)
    w_h2h, b_h2h = linear(keys[2], keys[3], hidden_size, hidden_size)
    w_h2o, b_h2o = linear(keys[4], keys[5], hidden_size, output_size)
    return (w_i2h, b_i2h, w_h2h, b_h2h, w_h2o, b_h2o)


def reference_rnn_forward(x_seq, hidden, params):
    """Pure-JAX reference matching the PyTorch forward, unrolled over time."""
    w_i2h, b_i2h, w_h2h, b_h2h, w_h2o, b_h2o = params
    outs = []
    for t in range(x_seq.shape[1]):
        hidden = jnp.tanh(x_seq[:, t] @ w_i2h.T + b_i2h + hidden @ w_h2h.T + b_h2h)
        logits = hidden @ w_h2o.T + b_h2o
        outs.append(jax.nn.log_softmax(logits, axis=1))
    return jnp.stack(outs, axis=1), hidden


if __name__ == "__main__":
    input_size, hidden_size, output_size = 16, 32, 8
    batch, seq_len = 2, 8

    key = jax.random.PRNGKey(0)
    k_param, k_x = jax.random.split(key)
    params = init_rnn_params(k_param, input_size, hidden_size, output_size)

    x_seq = jax.random.normal(k_x, (batch, seq_len, input_size), jnp.float32)
    hidden0 = jnp.zeros((batch, hidden_size), jnp.float32)  # initHidden (broadcast over batch)

    ref_out, ref_h = reference_rnn_forward(x_seq, hidden0, params)

    # --- f32 weights (exactness check) ---
    fwd = jax.jit(functools.partial(rnn_forward, t_blk=8))
    log_probs, h_final = fwd(x_seq, hidden0, params)
    log_probs = jax.block_until_ready(log_probs)
    h_final = jax.block_until_ready(h_final)
    assert log_probs.shape == (batch, seq_len, output_size)
    assert h_final.shape == (batch, hidden_size)
    assert jnp.allclose(log_probs, ref_out, atol=5e-5, rtol=5e-5), \
        float(jnp.max(jnp.abs(log_probs - ref_out)))
    assert jnp.allclose(h_final, ref_h, atol=5e-5, rtol=5e-5), \
        float(jnp.max(jnp.abs(h_final - ref_h)))

    # --- ragged sequence length (exercises the time-padding mask) ---
    T2 = 6
    x2 = x_seq[:, :T2]
    ref_out2, ref_h2 = reference_rnn_forward(x2, hidden0, params)
    fwd_ragged = jax.jit(functools.partial(rnn_forward, t_blk=4))
    lp2, hf2 = fwd_ragged(x2, hidden0, params)
    lp2 = jax.block_until_ready(lp2)
    hf2 = jax.block_until_ready(hf2)
    assert jnp.allclose(lp2, ref_out2, atol=5e-5, rtol=5e-5), \
        float(jnp.max(jnp.abs(lp2 - ref_out2)))
    assert jnp.allclose(hf2, ref_h2, atol=5e-5, rtol=5e-5), \
        float(jnp.max(jnp.abs(hf2 - ref_h2)))

    # --- bf16 weights (v6e/v7x MXU path); elementwise/accum stay f32 ---
    fwd_bf16 = jax.jit(functools.partial(rnn_forward, t_blk=8,
                                         weights_dtype=jnp.bfloat16))
    lp_bf, hf_bf = fwd_bf16(x_seq, hidden0, params)
    lp_bf = jax.block_until_ready(lp_bf)
    hf_bf = jax.block_until_ready(hf_bf)
    assert jnp.allclose(lp_bf, ref_out, atol=5e-2, rtol=5e-2), \
        float(jnp.max(jnp.abs(lp_bf - ref_out)))
    assert jnp.allclose(hf_bf, ref_h, atol=5e-2, rtol=5e-2), \
        float(jnp.max(jnp.abs(hf_bf - ref_h)))

    print("KERNEL_OK")
</pallas_src>

<mosaic_0001>
module attributes {stable_mosaic.version = 11 : i64} {
  func.func @rnn_recurrent_kernel(%arg0: i32, %arg1: memref<8x8x128xf32, #tpu.memory_space<vmem>>, %arg2: memref<8x128xf32, #tpu.memory_space<vmem>>, %arg3: memref<128x128xf32, #tpu.memory_space<vmem>>, %arg4: memref<8x8x128xf32, #tpu.memory_space<vmem>>, %arg5: memref<8x128xf32, #tpu.memory_space<vmem>>) attributes {dimension_semantics = [#tpu.dimension_semantics<arbitrary>], iteration_bounds = array<i64: 1>, scalar_prefetch = 0 : i64, scratch_operands = 0 : i64, tpu.core_type = #tpu.core_type<tc>, window_params = [{transform_indices = @transform_0, window_bounds = array<i64: 8, 8, 128>}, {pipeline_mode = #tpu.pipeline_mode<synchronous>, transform_indices = @transform_1, window_bounds = array<i64: 8, 128>}, {pipeline_mode = #tpu.pipeline_mode<synchronous>, transform_indices = @transform_2, window_bounds = array<i64: 128, 128>}, {transform_indices = @transform_3, window_bounds = array<i64: 8, 8, 128>}, {pipeline_mode = #tpu.pipeline_mode<synchronous>, transform_indices = @transform_4, window_bounds = array<i64: 8, 128>}]} {
    %c0_i32 = arith.constant 0 : i32
    %0 = arith.cmpi eq, %arg0, %c0_i32 : i32
    %1 = arith.extui %0 : i1 to i32
    %c0_i32_0 = arith.constant 0 : i32
    %2 = arith.cmpi ne, %1, %c0_i32_0 : i32
    scf.if %2 {
      %c0_46 = arith.constant 0 : index
      %c0_47 = arith.constant 0 : index
      %86 = vector.load %arg2[%c0_46, %c0_47] : memref<8x128xf32, #tpu.memory_space<vmem>>, vector<8x128xf32>
      %c0_48 = arith.constant 0 : index
      %c0_49 = arith.constant 0 : index
      %87 = vector.load %arg5[%c0_48, %c0_49] : memref<8x128xf32, #tpu.memory_space<vmem>>, vector<8x128xf32>
      tpu.vector_store %arg5[%c0_48, %c0_49], %86 {strides = array<i32>} : memref<8x128xf32, #tpu.memory_space<vmem>>, vector<8x128xf32>,
    } else {
    }
    %c0 = arith.constant 0 : index
    %c0_1 = arith.constant 0 : index
    %3 = vector.load %arg3[%c0, %c0_1] : memref<128x128xf32, #tpu.memory_space<vmem>>, vector<128x128xf32>
    %c0_2 = arith.constant 0 : index
    %c0_3 = arith.constant 0 : index
    %4 = vector.load %arg5[%c0_2, %c0_3] : memref<8x128xf32, #tpu.memory_space<vmem>>, vector<8x128xf32>
    %c0_i32_4 = arith.constant 0 : i32
    %5 = arith.index_cast %c0_i32_4 : i32 to index
    %c0_5 = arith.constant 0 : index
    %c0_6 = arith.constant 0 : index
    %6 = vector.load %arg1[%5, %c0_5, %c0_6] : memref<8x8x128xf32, #tpu.memory_space<vmem>>, vector<1x8x128xf32>
    %7 = vector.shape_cast %6 : vector<1x8x128xf32> to vector<8x128xf32>
    %cst = arith.constant dense<0.000000e+00> : vector<8x128xf32>
    %8 = tpu.matmul %4, %3, %cst {dimension_numbers = #tpu.dot_dimension_numbers<[1], [0], [0], [1], [0, 0, 1, 1], [], []>} : vector<8x128xf32>, vector<128x128xf32>, vector<8x128xf32> -> vector<8x128xf32>
    %9 = arith.addf %7, %8 : vector<8x128xf32>
    %10 = math.tanh %9 : vector<8x128xf32>
    %11 = arith.index_cast %c0_i32_4 : i32 to index
    %c0_7 = arith.constant 0 : index
    %c0_8 = arith.constant 0 : index
    %12 = vector.load %arg4[%11, %c0_7, %c0_8] : memref<8x8x128xf32, #tpu.memory_space<vmem>>, vector<1x8x128xf32>
    %13 = vector.shape_cast %12 : vector<1x8x128xf32> to vector<8x128xf32>
    %14 = vector.shape_cast %10 : vector<8x128xf32> to vector<1x8x128xf32>
    tpu.vector_store %arg4[%11, %c0_7, %c0_8], %14 {strides = array<i32>} : memref<8x8x128xf32, #tpu.memory_space<vmem>>, vector<1x8x128xf32>,
    %c1_i32 = arith.constant 1 : i32
    %15 = arith.index_cast %c1_i32 : i32 to index
    %c0_9 = arith.constant 0 : index
    %c0_10 = arith.constant 0 : index
    %16 = vector.load %arg1[%15, %c0_9, %c0_10] : memref<8x8x128xf32, #tpu.memory_space<vmem>>, vector<1x8x128xf32>
    %17 = vector.shape_cast %16 : vector<1x8x128xf32> to vector<8x128xf32>
    %cst_11 = arith.constant dense<0.000000e+00> : vector<8x128xf32>
    %18 = tpu.matmul %10, %3, %cst_11 {dimension_numbers = #tpu.dot_dimension_numbers<[1], [0], [0], [1], [0, 0, 1, 1], [], []>} : vector<8x128xf32>, vector<128x128xf32>, vector<8x128xf32> -> vector<8x128xf32>
    %19 = arith.addf %17, %18 : vector<8x128xf32>
    %20 = math.tanh %19 : vector<8x128xf32>
    %21 = arith.index_cast %c1_i32 : i32 to index
    %c0_12 = arith.constant 0 : index
    %c0_13 = arith.constant 0 : index
    %22 = vector.load %arg4[%21, %c0_12, %c0_13] : memref<8x8x128xf32, #tpu.memory_space<vmem>>, vector<1x8x128xf32>
    %23 = vector.shape_cast %22 : vector<1x8x128xf32> to vector<8x128xf32>
    %24 = vector.shape_cast %20 : vector<8x128xf32> to vector<1x8x128xf32>
    tpu.vector_store %arg4[%21, %c0_12, %c0_13], %24 {strides = array<i32>} : memref<8x8x128xf32, #tpu.memory_space<vmem>>, vector<1x8x128xf32>,
    %c2_i32 = arith.constant 2 : i32
    %25 = arith.index_cast %c2_i32 : i32 to index
    %c0_14 = arith.constant 0 : index
    %c0_15 = arith.constant 0 : index
    %26 = vector.load %arg1[%25, %c0_14, %c0_15] : memref<8x8x128xf32, #tpu.memory_space<vmem>>, vector<1x8x128xf32>
    %27 = vector.shape_cast %26 : vector<1x8x128xf32> to vector<8x128xf32>
    %cst_16 = arith.constant dense<0.000000e+00> : vector<8x128xf32>
    %28 = tpu.matmul %20, %3, %cst_16 {dimension_numbers = #tpu.dot_dimension_numbers<[1], [0], [0], [1], [0, 0, 1, 1], [], []>} : vector<8x128xf32>, vector<128x128xf32>, vector<8x128xf32> -> vector<8x128xf32>
    %29 = arith.addf %27, %28 : vector<8x128xf32>
    %30 = math.tanh %29 : vector<8x128xf32>
    %31 = arith.index_cast %c2_i32 : i32 to index
    %c0_17 = arith.constant 0 : index
    %c0_18 = arith.constant 0 : index
    %32 = vector.load %arg4[%31, %c0_17, %c0_18] : memref<8x8x128xf32, #tpu.memory_space<vmem>>, vector<1x8x128xf32>
    %33 = vector.shape_cast %32 : vector<1x8x128xf32> to vector<8x128xf32>
    %34 = vector.shape_cast %30 : vector<8x128xf32> to vector<1x8x128xf32>
    tpu.vector_store %arg4[%31, %c0_17, %c0_18], %34 {strides = array<i32>} : memref<8x8x128xf32, #tpu.memory_space<vmem>>, vector<1x8x128xf32>,
    %c3_i32 = arith.constant 3 : i32
    %35 = arith.index_cast %c3_i32 : i32 to index
    %c0_19 = arith.constant 0 : index
    %c0_20 = arith.constant 0 : index
    %36 = vector.load %arg1[%35, %c0_19, %c0_20] : memref<8x8x128xf32, #tpu.memory_space<vmem>>, vector<1x8x128xf32>
    %37 = vector.shape_cast %36 : vector<1x8x128xf32> to vector<8x128xf32>
    %cst_21 = arith.constant dense<0.000000e+00> : vector<8x128xf32>
    %38 = tpu.matmul %30, %3, %cst_21 {dimension_numbers = #tpu.dot_dimension_numbers<[1], [0], [0], [1], [0, 0, 1, 1], [], []>} : vector<8x128xf32>, vector<128x128xf32>, vector<8x128xf32> -> vector<8x128xf32>
    %39 = arith.addf %37, %38 : vector<8x128xf32>
    %40 = math.tanh %39 : vector<8x128xf32>
    %41 = arith.index_cast %c3_i32 : i32 to index
    %c0_22 = arith.constant 0 : index
    %c0_23 = arith.constant 0 : index
    %42 = vector.load %arg4[%41, %c0_22, %c0_23] : memref<8x8x128xf32, #tpu.memory_space<vmem>>, vector<1x8x128xf32>
    %43 = vector.shape_cast %42 : vector<1x8x128xf32> to vector<8x128xf32>
    %44 = vector.shape_cast %40 : vector<8x128xf32> to vector<1x8x128xf32>
    tpu.vector_store %arg4[%41, %c0_22, %c0_23], %44 {strides = array<i32>} : memref<8x8x128xf32, #tpu.memory_space<vmem>>, vector<1x8x128xf32>,
    %c4_i32 = arith.constant 4 : i32
    %45 = arith.index_cast %c4_i32 : i32 to index
    %c0_24 = arith.constant 0 : index
    %c0_25 = arith.constant 0 : index
    %46 = vector.load %arg1[%45, %c0_24, %c0_25] : memref<8x8x128xf32, #tpu.memory_space<vmem>>, vector<1x8x128xf32>
    %47 = vector.shape_cast %46 : vector<1x8x128xf32> to vector<8x128xf32>
    %cst_26 = arith.constant dense<0.000000e+00> : vector<8x128xf32>
    %48 = tpu.matmul %40, %3, %cst_26 {dimension_numbers = #tpu.dot_dimension_numbers<[1], [0], [0], [1], [0, 0, 1, 1], [], []>} : vector<8x128xf32>, vector<128x128xf32>, vector<8x128xf32> -> vector<8x128xf32>
    %49 = arith.addf %47, %48 : vector<8x128xf32>
    %50 = math.tanh %49 : vector<8x128xf32>
    %51 = arith.index_cast %c4_i32 : i32 to index
    %c0_27 = arith.constant 0 : index
    %c0_28 = arith.constant 0 : index
    %52 = vector.load %arg4[%51, %c0_27, %c0_28] : memref<8x8x128xf32, #tpu.memory_space<vmem>>, vector<1x8x128xf32>
    %53 = vector.shape_cast %52 : vector<1x8x128xf32> to vector<8x128xf32>
    %54 = vector.shape_cast %50 : vector<8x128xf32> to vector<1x8x128xf32>
    tpu.vector_store %arg4[%51, %c0_27, %c0_28], %54 {strides = array<i32>} : memref<8x8x128xf32, #tpu.memory_space<vmem>>, vector<1x8x128xf32>,
    %c5_i32 = arith.constant 5 : i32
    %55 = arith.index_cast %c5_i32 : i32 to index
    %c0_29 = arith.constant 0 : index
    %c0_30 = arith.constant 0 : index
    %56 = vector.load %arg1[%55, %c0_29, %c0_30] : memref<8x8x128xf32, #tpu.memory_space<vmem>>, vector<1x8x128xf32>
    %57 = vector.shape_cast %56 : vector<1x8x128xf32> to vector<8x128xf32>
    %cst_31 = arith.constant dense<0.000000e+00> : vector<8x128xf32>
    %58 = tpu.matmul %50, %3, %cst_31 {dimension_numbers = #tpu.dot_dimension_numbers<[1], [0], [0], [1], [0, 0, 1, 1], [], []>} : vector<8x128xf32>, vector<128x128xf32>, vector<8x128xf32> -> vector<8x128xf32>
    %59 = arith.addf %57, %58 : vector<8x128xf32>
    %60 = math.tanh %59 : vector<8x128xf32>
    %61 = arith.index_cast %c5_i32 : i32 to index
    %c0_32 = arith.constant 0 : index
    %c0_33 = arith.constant 0 : index
    %62 = vector.load %arg4[%61, %c0_32, %c0_33] : memref<8x8x128xf32, #tpu.memory_space<vmem>>, vector<1x8x128xf32>
    %63 = vector.shape_cast %62 : vector<1x8x128xf32> to vector<8x128xf32>
    %64 = vector.shape_cast %60 : vector<8x128xf32> to vector<1x8x128xf32>
    tpu.vector_store %arg4[%61, %c0_32, %c0_33], %64 {strides = array<i32>} : memref<8x8x128xf32, #tpu.memory_space<vmem>>, vector<1x8x128xf32>,
    %c6_i32 = arith.constant 6 : i32
    %65 = arith.index_cast %c6_i32 : i32 to index
    %c0_34 = arith.constant 0 : index
    %c0_35 = arith.constant 0 : index
    %66 = vector.load %arg1[%65, %c0_34, %c0_35] : memref<8x8x128xf32, #tpu.memory_space<vmem>>, vector<1x8x128xf32>
    %67 = vector.shape_cast %66 : vector<1x8x128xf32> to vector<8x128xf32>
    %cst_36 = arith.constant dense<0.000000e+00> : vector<8x128xf32>
    %68 = tpu.matmul %60, %3, %cst_36 {dimension_numbers = #tpu.dot_dimension_numbers<[1], [0], [0], [1], [0, 0, 1, 1], [], []>} : vector<8x128xf32>, vector<128x128xf32>, vector<8x128xf32> -> vector<8x128xf32>
    %69 = arith.addf %67, %68 : vector<8x128xf32>
    %70 = math.tanh %69 : vector<8x128xf32>
    %71 = arith.index_cast %c6_i32 : i32 to index
    %c0_37 = arith.constant 0 : index
    %c0_38 = arith.constant 0 : index
    %72 = vector.load %arg4[%71, %c0_37, %c0_38] : memref<8x8x128xf32, #tpu.memory_space<vmem>>, vector<1x8x128xf32>
    %73 = vector.shape_cast %72 : vector<1x8x128xf32> to vector<8x128xf32>
    %74 = vector.shape_cast %70 : vector<8x128xf32> to vector<1x8x128xf32>
    tpu.vector_store %arg4[%71, %c0_37, %c0_38], %74 {strides = array<i32>} : memref<8x8x128xf32, #tpu.memory_space<vmem>>, vector<1x8x128xf32>,
    %c7_i32 = arith.constant 7 : i32
    %75 = arith.index_cast %c7_i32 : i32 to index
    %c0_39 = arith.constant 0 : index
    %c0_40 = arith.constant 0 : index
    %76 = vector.load %arg1[%75, %c0_39, %c0_40] : memref<8x8x128xf32, #tpu.memory_space<vmem>>, vector<1x8x128xf32>
    %77 = vector.shape_cast %76 : vector<1x8x128xf32> to vector<8x128xf32>
    %cst_41 = arith.constant dense<0.000000e+00> : vector<8x128xf32>
    %78 = tpu.matmul %70, %3, %cst_41 {dimension_numbers = #tpu.dot_dimension_numbers<[1], [0], [0], [1], [0, 0, 1, 1], [], []>} : vector<8x128xf32>, vector<128x128xf32>, vector<8x128xf32> -> vector<8x128xf32>
    %79 = arith.addf %77, %78 : vector<8x128xf32>
    %80 = math.tanh %79 : vector<8x128xf32>
    %81 = arith.index_cast %c7_i32 : i32 to index
    %c0_42 = arith.constant 0 : index
    %c0_43 = arith.constant 0 : index
    %82 = vector.load %arg4[%81, %c0_42, %c0_43] : memref<8x8x128xf32, #tpu.memory_space<vmem>>, vector<1x8x128xf32>
    %83 = vector.shape_cast %82 : vector<1x8x128xf32> to vector<8x128xf32>
    %84 = vector.shape_cast %80 : vector<8x128xf32> to vector<1x8x128xf32>
    tpu.vector_store %arg4[%81, %c0_42, %c0_43], %84 {strides = array<i32>} : memref<8x8x128xf32, #tpu.memory_space<vmem>>, vector<1x8x128xf32>,
    %c8_i32 = arith.constant 8 : i32
    %c0_44 = arith.constant 0 : index
    %c0_45 = arith.constant 0 : index
    %85 = vector.load %arg5[%c0_44, %c0_45] : memref<8x128xf32, #tpu.memory_space<vmem>>, vector<8x128xf32>
    tpu.vector_store %arg5[%c0_44, %c0_45], %80 {strides = array<i32>} : memref<8x128xf32, #tpu.memory_space<vmem>>, vector<8x128xf32>,
    return
  }
  func.func @transform_0(%arg0: i32) -> (i32, i32, i32) {
    %c0_i32 = arith.constant 0 : i32
    %c0_i32_0 = arith.constant 0 : i32
    %c0_i32_1 = arith.constant 0 : i32
    return %arg0, %c0_i32, %c0_i32_0 : i32, i32, i32
  }
  func.func @transform_1(%arg0: i32) -> (i32, i32) {
    %c0_i32 = arith.constant 0 : i32
    %c0_i32_0 = arith.constant 0 : i32
    %c0_i32_1 = arith.constant 0 : i32
    return %c0_i32, %c0_i32_0 : i32, i32
  }
  func.func @transform_2(%arg0: i32) -> (i32, i32) {
    %c0_i32 = arith.constant 0 : i32
    %c0_i32_0 = arith.constant 0 : i32
    %c0_i32_1 = arith.constant 0 : i32
    return %c0_i32, %c0_i32_0 : i32, i32
  }
  func.func @transform_3(%arg0: i32) -> (i32, i32, i32) {
    %c0_i32 = arith.constant 0 : i32
    %c0_i32_0 = arith.constant 0 : i32
    %c0_i32_1 = arith.constant 0 : i32
    return %arg0, %c0_i32, %c0_i32_0 : i32, i32, i32
  }
  func.func @transform_4(%arg0: i32) -> (i32, i32) {
    %c0_i32 = arith.constant 0 : i32
    %c0_i32_0 = arith.constant 0 : i32
    %c0_i32_1 = arith.constant 0 : i32
    return %c0_i32, %c0_i32_0 : i32, i32
  }
}

module attributes {stable_mosaic.version = 11 : i64} {
  func.func @rnn_head_kernel(%arg0: i32, %arg1: memref<64x128xf32, #tpu.memory_space<vmem>>, %arg2: memref<128x128xf32, #tpu.memory_space<vmem>>, %arg3: memref<1x128xf32, #tpu.memory_space<vmem>>, %arg4: memref<64x128xf32, #tpu.memory_space<vmem>>) attributes {dimension_semantics = [#tpu.dimension_semantics<parallel>], iteration_bounds = array<i64: 1>, scalar_prefetch = 0 : i64, scratch_operands = 0 : i64, tpu.core_type = #tpu.core_type<tc>, window_params = [{transform_indices = @transform_0, window_bounds = array<i64: 64, 128>}, {pipeline_mode = #tpu.pipeline_mode<synchronous>, transform_indices = @transform_1, window_bounds = array<i64: 128, 128>}, {pipeline_mode = #tpu.pipeline_mode<synchronous>, transform_indices = @transform_2, window_bounds = array<i64: 1, 128>}, {transform_indices = @transform_3, window_bounds = array<i64: 64, 128>}]} {
    %c0 = arith.constant 0 : index
    %c0_0 = arith.constant 0 : index
    %0 = vector.load %arg1[%c0, %c0_0] : memref<64x128xf32, #tpu.memory_space<vmem>>, vector<64x128xf32>
    %c0_1 = arith.constant 0 : index
    %c0_2 = arith.constant 0 : index
    %1 = vector.load %arg2[%c0_1, %c0_2] : memref<128x128xf32, #tpu.memory_space<vmem>>, vector<128x128xf32>
    %cst = arith.constant dense<0.000000e+00> : vector<64x128xf32>
    %2 = tpu.matmul %0, %1, %cst {dimension_numbers = #tpu.dot_dimension_numbers<[1], [0], [0], [1], [0, 0, 1, 1], [], []>} : vector<64x128xf32>, vector<128x128xf32>, vector<64x128xf32> -> vector<64x128xf32>
    %c0_3 = arith.constant 0 : index
    %c0_4 = arith.constant 0 : index
    %3 = vector.load %arg3[%c0_3, %c0_4] : memref<1x128xf32, #tpu.memory_space<vmem>>, vector<1x128xf32>
    %4 = vector.broadcast %3 : vector<1x128xf32> to vector<64x128xf32>
    %5 = arith.addf %2, %4 : vector<64x128xf32>
    %cst_5 = arith.constant dense<0xFF800000> : vector<64xf32>
    %6 = vector.multi_reduction <maximumf>, %5, %cst_5 [1] : vector<64x128xf32> to vector<64xf32>
    %7 = vector.shape_cast %6 : vector<64xf32> to vector<64x1xf32>
    %8 = vector.broadcast %7 : vector<64x1xf32> to vector<64x128xf32>
    %9 = arith.subf %5, %8 : vector<64x128xf32>
    %10 = math.exp %9 : vector<64x128xf32>
    %cst_6 = arith.constant dense<0.000000e+00> : vector<64xf32>
    %11 = vector.multi_reduction <add>, %10, %cst_6 [1] : vector<64x128xf32> to vector<64xf32>
    %12 = vector.shape_cast %11 : vector<64xf32> to vector<64x1xf32>
    %13 = math.log %12 : vector<64x1xf32>
    %14 = vector.broadcast %13 : vector<64x1xf32> to vector<64x128xf32>
    %15 = arith.subf %9, %14 : vector<64x128xf32>
    %c0_7 = arith.constant 0 : index
    %c0_8 = arith.constant 0 : index
    %16 = vector.load %arg4[%c0_7, %c0_8] : memref<64x128xf32, #tpu.memory_space<vmem>>, vector<64x128xf32>
    tpu.vector_store %arg4[%c0_7, %c0_8], %15 {strides = array<i32>} : memref<64x128xf32, #tpu.memory_space<vmem>>, vector<64x128xf32>,
    return
  }
  func.func @transform_0(%arg0: i32) -> (i32, i32) {
    %c0_i32 = arith.constant 0 : i32
    %c0_i32_0 = arith.constant 0 : i32
    return %arg0, %c0_i32 : i32, i32
  }
  func.func @transform_1(%arg0: i32) -> (i32, i32) {
    %c0_i32 = arith.constant 0 : i32
    %c0_i32_0 = arith.constant 0 : i32
    %c0_i32_1 = arith.constant 0 : i32
    return %c0_i32, %c0_i32_0 : i32, i32
  }
  func.func @transform_2(%arg0: i32) -> (i32, i32) {
    %c0_i32 = arith.constant 0 : i32
    %c0_i32_0 = arith.constant 0 : i32
    %c0_i32_1 = arith.constant 0 : i32
    return %c0_i32, %c0_i32_0 : i32, i32
  }
  func.func @transform_3(%arg0: i32) -> (i32, i32) {
    %c0_i32 = arith.constant 0 : i32
    %c0_i32_0 = arith.constant 0 : i32
    return %arg0, %c0_i32 : i32, i32
  }
}

</mosaic_0001>

<llo_original>
// kernel: rnn_forward.3
$region0: #{rnn_forward.3}
  #allocation0 [shape = 'u32[]', space=smem, size = 0x4, offset = 0x4, fixed_abs, tag = 'smem constant byte address 0x4 - core index']
  #allocation1 [shape = 'u32[144,128]{1,0:T(1,128)}', space=vmem, size = 0x12000, scoped, tag = 'internal scratch']
  %s0 = inlined_call_operand.vmem [shape: f32[64,128], index: 0, kind: input, shape index: {}]
  %s1 = inlined_call_operand.vmem [shape: f32[128,128], index: 1, kind: input, shape index: {}]
  %s2 = inlined_call_operand.vmem [shape: f32[1,128], index: 2, kind: input, shape index: {}]
  %s3 = inlined_call_operand.vmem [shape: f32[64,128], index: 3, kind: output, shape index: {}]
  %s4 = sld [smem:[#allocation0]]
  $region22: #{rnn_forward.3} parent=0
    _
  %s6 = ssub.s32 1, %s4
  %s7 = scalar_select 0, %s6, %s4
  // Predicated region
  $region2: #{rnn_forward.3} parent=0 // pred_check
    _
  $region3: #{rnn_forward.3} parent=0 // pred_check_branch
    %9 = sbr.rel (0) target = $region5
  $region4: #{rnn_forward.3} parent=0 // pred_region
    _
  $region5: #{rnn_forward.3} parent=0 // pred_fallthru
    _
  // Predicated region
  $region6: #{rnn_forward.3} parent=0 // pred_check
    _
  $region7: #{rnn_forward.3} parent=0 // pred_check_branch
    %11 = sbr.rel (0) target = $region9
  $region8: #{rnn_forward.3} parent=0 // pred_region
    _
  $region9: #{rnn_forward.3} parent=0 // pred_fallthru
    _
  // Predicated region
  $region10: #{rnn_forward.3} parent=0 // pred_check
    _
  $region11: #{rnn_forward.3} parent=0 // pred_check_branch
    %13 = sbr.rel (0) target = $region13
  $region12: #{rnn_forward.3} parent=0 // pred_region
    _
  $region13: #{rnn_forward.3} parent=0 // pred_fallthru
    _
  %v14 = vld [vmem:[%s0] sm:$0xff]
  %v15 = vld [vmem:[%s0 + $0x8] sm:$0xff]
  %v16 = vld [vmem:[%s0 + $0x10] sm:$0xff]
  %v17 = vld [vmem:[%s0 + $0x18] sm:$0xff]
  %v18 = vld [vmem:[%s0 + $0x20] sm:$0xff]
  %v19 = vld [vmem:[%s0 + $0x28] sm:$0xff]
  %v20 = vld [vmem:[%s0 + $0x30] sm:$0xff]
  %v21 = vld [vmem:[%s0 + $0x38] sm:$0xff]
  %v22 = vld [vmem:[%s1] sm:$0xff]
  %v23 = vld [vmem:[%s1 + $0x8] sm:$0xff]
  %v24 = vld [vmem:[%s1 + $0x10] sm:$0xff]
  %v25 = vld [vmem:[%s1 + $0x18] sm:$0xff]
  %v26 = vld [vmem:[%s1 + $0x20] sm:$0xff]
  %v27 = vld [vmem:[%s1 + $0x28] sm:$0xff]
  %v28 = vld [vmem:[%s1 + $0x30] sm:$0xff]
  %v29 = vld [vmem:[%s1 + $0x38] sm:$0xff]
  %v30 = vld [vmem:[%s1 + $0x40] sm:$0xff]
  %v31 = vld [vmem:[%s1 + $0x48] sm:$0xff]
  %v32 = vld [vmem:[%s1 + $0x50] sm:$0xff]
  %v33 = vld [vmem:[%s1 + $0x58] sm:$0xff]
  %v34 = vld [vmem:[%s1 + $0x60] sm:$0xff]
  %v35 = vld [vmem:[%s1 + $0x68] sm:$0xff]
  %v36 = vld [vmem:[%s1 + $0x70] sm:$0xff]
  %v37 = vld [vmem:[%s1 + $0x78] sm:$0xff]
  %v38 = vld [vmem:[%s2] sm:$0x1]
  %v40 = vlaneseq
  %v41 = vshrl.u32 %v40, 7
  %v42 = vsub.s32 0, %v41
  %v43 = vrot.slane %v38, %v42
  %45 = vmatprep.subr.mxu0 0.0
  %46 = vmatpush1.msra.mxu0 %v37
  %47 = vmatprep.subr.mxu0 0.0
  %48 = vmatpush1.msra.mxu0 %v36
  %49 = vmatprep.subr.mxu0 0.0
  %50 = vmatpush1.msra.mxu0 %v35
  %51 = vmatprep.subr.mxu0 0.0
  %52 = vmatpush1.msra.mxu0 %v34
  %53 = vmatprep.subr.mxu0 0.0
  %54 = vmatpush1.msra.mxu0 %v33
  %55 = vmatprep.subr.mxu0 0.0
  %56 = vmatpush1.msra.mxu0 %v32
  %57 = vmatprep.subr.mxu0 0.0
  %58 = vmatpush1.msra.mxu0 %v31
  %59 = vmatprep.subr.mxu0 0.0
  %60 = vmatpush1.msra.mxu0 %v30
  %61 = vmatprep.subr.mxu0 0.0
  %62 = vmatpush1.msra.mxu0 %v29
  %63 = vmatprep.subr.mxu0 0.0
  %64 = vmatpush1.msra.mxu0 %v28
  %65 = vmatprep.subr.mxu0 0.0
  %66 = vmatpush1.msra.mxu0 %v27
  %67 = vmatprep.subr.mxu0 0.0
  %68 = vmatpush1.msra.mxu0 %v26
  %69 = vmatprep.subr.mxu0 0.0
  %70 = vmatpush1.msra.mxu0 %v25
  %71 = vmatprep.subr.mxu0 0.0
  %72 = vmatpush1.msra.mxu0 %v24
  %73 = vmatprep.subr.mxu0 0.0
  %74 = vmatpush1.msra.mxu0 %v23
  %75 = vmatprep.subr.mxu0 0.0
  %76 = vmatpush1.msra.mxu0 %v22
  %77 = vmatprep.subr.mxu0 0.0
  %78 = vmatpush2.msra.mxu0 0.0
  %79 = vmatprep.subr.mxu0 0.0
  %80 = vmatpush2.msra.mxu0 0.0
  %81 = vmatprep.subr.mxu0 0.0
  %82 = vmatpush2.msra.mxu0 0.0
  %83 = vmatprep.subr.mxu0 0.0
  %84 = vmatpush2.msra.mxu0 0.0
  %85 = vmatprep.subr.mxu0 0.0
  %86 = vmatpush2.msra.mxu0 0.0
  %87 = vmatprep.subr.mxu0 0.0
  %88 = vmatpush2.msra.mxu0 0.0
  %89 = vmatprep.subr.mxu0 0.0
  %90 = vmatpush2.msra.mxu0 0.0
  %91 = vmatprep.subr.mxu0 0.0
  %92 = vmatpush2.msra.mxu0 0.0
  %93 = vmatprep.subr.mxu0 0.0
  %94 = vmatpush2.msra.mxu0 0.0
  %95 = vmatprep.subr.mxu0 0.0
  %96 = vmatpush2.msra.mxu0 0.0
  %97 = vmatprep.subr.mxu0 0.0
  %98 = vmatpush2.msra.mxu0 0.0
  %99 = vmatprep.subr.mxu0 0.0
  %100 = vmatpush2.msra.mxu0 0.0
  %101 = vmatprep.subr.mxu0 0.0
  %102 = vmatpush2.msra.mxu0 0.0
  %103 = vmatprep.subr.mxu0 0.0
  %104 = vmatpush2.msra.mxu0 0.0
  %105 = vmatprep.subr.mxu0 0.0
  %106 = vmatpush2.msra.mxu0 0.0
  %107 = vmatprep.subr.mxu0 0.0
  %108 = vmatpush2.msra.mxu0 0.0
  %109 = vmatprep.mubr.f32.mxu0 0.0
  %110 = vmatmul.mubr.f32.gmra.mxu0 %v14
  %v111 = vpop.f32.mrf.mxu0
  %v112 = vadd.f32 %v43, %v111
  %v113 = vpop.f32.mrf.mxu0
  %114 = vmatprep.mubr.f32.mxu0 0.0
  %115 = vmatmul.mubr.f32.gmra.mxu0 %v15
  %v116 = vpop.f32.mrf.mxu0
  %v117 = vadd.f32 %v43, %v116
  %v118 = vpop.f32.mrf.mxu0
  %119 = vmatprep.mubr.f32.mxu0 0.0
  %120 = vmatmul.mubr.f32.gmra.mxu0 %v16
  %v121 = vpop.f32.mrf.mxu0
  %v122 = vadd.f32 %v43, %v121
  %v123 = vpop.f32.mrf.mxu0
  %124 = vmatprep.mubr.f32.mxu0 0.0
  %125 = vmatmul.mubr.f32.gmra.mxu0 %v17
  %v126 = vpop.f32.mrf.mxu0
  %v127 = vadd.f32 %v43, %v126
  %v128 = vpop.f32.mrf.mxu0
  %129 = vmatprep.mubr.f32.mxu0 0.0
  %130 = vmatmul.mubr.f32.gmra.mxu0 %v18
  %v131 = vpop.f32.mrf.mxu0
  %v132 = vadd.f32 %v43, %v131
  %v133 = vpop.f32.mrf.mxu0
  %134 = vmatprep.mubr.f32.mxu0 0.0
  %135 = vmatmul.mubr.f32.gmra.mxu0 %v19
  %v136 = vpop.f32.mrf.mxu0
  %v137 = vadd.f32 %v43, %v136
  %v138 = vpop.f32.mrf.mxu0
  %139 = vmatprep.mubr.f32.mxu0 0.0
  %140 = vmatmul.mubr.f32.gmra.mxu0 %v20
  %v141 = vpop.f32.mrf.mxu0
  %v142 = vadd.f32 %v43, %v141
  %v143 = vpop.f32.mrf.mxu0
  %144 = vmatprep.mubr.f32.mxu0 0.0
  %145 = vmatmul.mubr.f32.gmra.mxu0 %v21
  %v146 = vpop.f32.mrf.mxu0
  %v147 = vadd.f32 %v43, %v146
  %v148 = vpop.f32.mrf.mxu0
  %149 = vdwg.mxu0
  %150 = vmax.xlane.f32.xlu0 %v112
  %v151 = vpop.xlane.xlu0 %150
  %152 = vmax.xlane.f32.xlu0 %v117
  %v153 = vpop.xlane.xlu0 %152
  %154 = vmax.xlane.f32.xlu0 %v122
  %v155 = vpop.xlane.xlu0 %154
  %156 = vmax.xlane.f32.xlu0 %v127
  %v157 = vpop.xlane.xlu0 %156
  %158 = vmax.xlane.f32.xlu0 %v132
  %v159 = vpop.xlane.xlu0 %158
  %160 = vmax.xlane.f32.xlu0 %v137
  %v161 = vpop.xlane.xlu0 %160
  %162 = vmax.xlane.f32.xlu0 %v142
  %v163 = vpop.xlane.xlu0 %162
  %164 = vmax.xlane.f32.xlu0 %v147
  %v165 = vpop.xlane.xlu0 %164
  %v166 = vsub.f32 %v112, %v151
  %v167 = vsub.f32 %v117, %v153
  %v168 = vsub.f32 %v122, %v155
  %v169 = vsub.f32 %v127, %v157
  %v170 = vsub.f32 %v132, %v159
  %v171 = vsub.f32 %v137, %v161
  %v172 = vsub.f32 %v142, %v163
  %v173 = vsub.f32 %v147, %v165
  %v174 = vmul.f32 %v166, 1.442695
  %v175 = vpow.pop %v174
  %v176 = vmul.f32 %v167, 1.442695
  %v177 = vpow.pop %v176
  %v178 = vmul.f32 %v168, 1.442695
  %v179 = vpow.pop %v178
  %v180 = vmul.f32 %v169, 1.442695
  %v181 = vpow.pop %v180
  %v182 = vmul.f32 %v170, 1.442695
  %v183 = vpow.pop %v182
  %v184 = vmul.f32 %v171, 1.442695
  %v185 = vpow.pop %v184
  %v186 = vmul.f32 %v172, 1.442695
  %v187 = vpow.pop %v186
  %v188 = vmul.f32 %v173, 1.442695
  %v189 = vpow.pop %v188
  %190 = vadd.xlane.f32.xlu0 %v175
  %v191 = vpop.xlane.xlu0 %190
  %192 = vadd.xlane.f32.xlu0 %v177
  %v193 = vpop.xlane.xlu0 %192
  %194 = vadd.xlane.f32.xlu0 %v179
  %v195 = vpop.xlane.xlu0 %194
  %196 = vadd.xlane.f32.xlu0 %v181
  %v197 = vpop.xlane.xlu0 %196
  %198 = vadd.xlane.f32.xlu0 %v183
  %v199 = vpop.xlane.xlu0 %198
  %200 = vadd.xlane.f32.xlu0 %v185
  %v201 = vpop.xlane.xlu0 %200
  %202 = vadd.xlane.f32.xlu0 %v187
  %v203 = vpop.xlane.xlu0 %202
  %204 = vadd.xlane.f32.xlu0 %v189
  %v205 = vpop.xlane.xlu0 %204
  %v206 = vlog2.pop %v191
  %v207 = vmul.f32 %v206, 0.6931472
  %v208 = vlog2.pop %v193
  %v209 = vmul.f32 %v208, 0.6931472
  %v210 = vlog2.pop %v195
  %v211 = vmul.f32 %v210, 0.6931472
  %v212 = vlog2.pop %v197
  %v213 = vmul.f32 %v212, 0.6931472
  %v214 = vlog2.pop %v199
  %v215 = vmul.f32 %v214, 0.6931472
  %v216 = vlog2.pop %v201
  %v217 = vmul.f32 %v216, 0.6931472
  %v218 = vlog2.pop %v203
  %v219 = vmul.f32 %v218, 0.6931472
  %v220 = vlog2.pop %v205
  %v221 = vmul.f32 %v220, 0.6931472
  %v222 = vsub.f32 %v166, %v207
  %v223 = vsub.f32 %v167, %v209
  %v224 = vsub.f32 %v168, %v211
  %v225 = vsub.f32 %v169, %v213
  %v226 = vsub.f32 %v170, %v215
  %v227 = vsub.f32 %v171, %v217
  %v228 = vsub.f32 %v172, %v219
  %v229 = vsub.f32 %v173, %v221
  %230 = vst [vmem:[%s3] sm:$0xff] %v222
  %231 = vst [vmem:[%s3 + $0x8] sm:$0xff] %v223
  %232 = vst [vmem:[%s3 + $0x10] sm:$0xff] %v224
  %233 = vst [vmem:[%s3 + $0x18] sm:$0xff] %v225
  %234 = vst [vmem:[%s3 + $0x20] sm:$0xff] %v226
  %235 = vst [vmem:[%s3 + $0x28] sm:$0xff] %v227
  %236 = vst [vmem:[%s3 + $0x30] sm:$0xff] %v228
  %237 = vst [vmem:[%s3 + $0x38] sm:$0xff] %v229
  // Predicated region
  $region14: #{rnn_forward.3} parent=0 // pred_check
    _
  $region15: #{rnn_forward.3} parent=0 // pred_check_branch
    %239 = sbr.rel (0) target = $region17
  $region16: #{rnn_forward.3} parent=0 // pred_region
    _
  $region17: #{rnn_forward.3} parent=0 // pred_fallthru
    _
  // Predicated region
  $region18: #{rnn_forward.3} parent=0 // pred_check
    _
  $region19: #{rnn_forward.3} parent=0 // pred_check_branch
    %241 = sbr.rel (0) target = $region21
  $region20: #{rnn_forward.3} parent=0 // pred_region
    _
  $region21: #{rnn_forward.3} parent=0 // pred_fallthru
    _

// kernel: rnn_forward.2
$region0: #{rnn_forward.2}
  #allocation0 [shape = 'u32[]', space=smem, size = 0x4, offset = 0x4, fixed_abs, tag = 'smem constant byte address 0x4 - core index']
  #allocation1 [shape = 'u32[144,128]{1,0:T(1,128)}', space=vmem, size = 0x12000, scoped, tag = 'internal scratch']
  %s0 = inlined_call_operand.vmem [shape: f32[8,8,128], index: 0, kind: input, shape index: {}]
  %s1 = inlined_call_operand.vmem [shape: f32[8,128], index: 1, kind: input, shape index: {}]
  %s2 = inlined_call_operand.vmem [shape: f32[128,128], index: 2, kind: input, shape index: {}]
  %s3 = inlined_call_operand.vmem [shape: f32[8,8,128], index: 3, kind: output, shape index: {0}]
  %s4 = inlined_call_operand.vmem [shape: f32[8,128], index: 4, kind: output, shape index: {1}]
  %5 = xla_tuple %s3, %s4
  %s6 = sld [smem:[#allocation0]]
  $region34: #{rnn_forward.2} parent=0
    _
  %s8 = ssub.s32 1, %s6
  %s9 = scalar_select 0, %s8, %s6
  // Predicated region
  $region2: #{rnn_forward.2} parent=0 // pred_check
    _
  $region3: #{rnn_forward.2} parent=0 // pred_check_branch
    %11 = sbr.rel (0) target = $region5
  $region4: #{rnn_forward.2} parent=0 // pred_region
    _
  $region5: #{rnn_forward.2} parent=0 // pred_fallthru
    _
  // Predicated region
  $region6: #{rnn_forward.2} parent=0 // pred_check
    _
  $region7: #{rnn_forward.2} parent=0 // pred_check_branch
    %13 = sbr.rel (0) target = $region9
  $region8: #{rnn_forward.2} parent=0 // pred_region
    _
  $region9: #{rnn_forward.2} parent=0 // pred_fallthru
    _
  // Predicated region
  $region10: #{rnn_forward.2} parent=0 // pred_check
    _
  $region11: #{rnn_forward.2} parent=0 // pred_check_branch
    %15 = sbr.rel (0) target = $region13
  $region12: #{rnn_forward.2} parent=0 // pred_region
    _
  $region13: #{rnn_forward.2} parent=0 // pred_fallthru
    _
  %p16 = scmp.eq.s32.totalorder 0, 0
  // Predicated region
  $region14: #{rnn_forward.2} parent=0 // pred_check
    %p17 = pneg %p16
  $region15: #{rnn_forward.2} parent=0 // pred_check_branch
    %19 = sbr.rel (%p17) target = $region17
  $region16: #{rnn_forward.2} parent=0 // pred_region
    %v20 = vld [vmem:[%s1] sm:$0xff]
    %21 = vst [vmem:[%s4] sm:$0xff] %v20
  $region17: #{rnn_forward.2} parent=0 // pred_fallthru
    _
  %v22 = vld [vmem:[%s2] sm:$0xff]
  %v23 = vld [vmem:[%s2 + $0x8] sm:$0xff]
  %v24 = vld [vmem:[%s2 + $0x10] sm:$0xff]
  %v25 = vld [vmem:[%s2 + $0x18] sm:$0xff]
  %v26 = vld [vmem:[%s2 + $0x20] sm:$0xff]
  %v27 = vld [vmem:[%s2 + $0x28] sm:$0xff]
  %v28 = vld [vmem:[%s2 + $0x30] sm:$0xff]
  %v29 = vld [vmem:[%s2 + $0x38] sm:$0xff]
  %v30 = vld [vmem:[%s2 + $0x40] sm:$0xff]
  %v31 = vld [vmem:[%s2 + $0x48] sm:$0xff]
  %v32 = vld [vmem:[%s2 + $0x50] sm:$0xff]
  %v33 = vld [vmem:[%s2 + $0x58] sm:$0xff]
  %v34 = vld [vmem:[%s2 + $0x60] sm:$0xff]
  %v35 = vld [vmem:[%s2 + $0x68] sm:$0xff]
  %v36 = vld [vmem:[%s2 + $0x70] sm:$0xff]
  %v37 = vld [vmem:[%s2 + $0x78] sm:$0xff]
  %v38 = vld [vmem:[%s4] sm:$0xff]
  %v39 = vld [vmem:[%s0] sm:$0xff]
  %40 = vmatprep.subr.mxu0 0.0
  %41 = vmatpush1.msra.mxu0 %v37
  %42 = vmatprep.subr.mxu0 0.0
  %43 = vmatpush1.msra.mxu0 %v36
  %44 = vmatprep.subr.mxu0 0.0
  %45 = vmatpush1.msra.mxu0 %v35
  %46 = vmatprep.subr.mxu0 0.0
  %47 = vmatpush1.msra.mxu0 %v34
  %48 = vmatprep.subr.mxu0 0.0
  %49 = vmatpush1.msra.mxu0 %v33
  %50 = vmatprep.subr.mxu0 0.0
  %51 = vmatpush1.msra.mxu0 %v32
  %52 = vmatprep.subr.mxu0 0.0
  %53 = vmatpush1.msra.mxu0 %v31
  %54 = vmatprep.subr.mxu0 0.0
  %55 = vmatpush1.msra.mxu0 %v30
  %56 = vmatprep.subr.mxu0 0.0
  %57 = vmatpush1.msra.mxu0 %v29
  %58 = vmatprep.subr.mxu0 0.0
  %59 = vmatpush1.msra.mxu0 %v28
  %60 = vmatprep.subr.mxu0 0.0
  %61 = vmatpush1.msra.mxu0 %v27
  %62 = vmatprep.subr.mxu0 0.0
  %63 = vmatpush1.msra.mxu0 %v26
  %64 = vmatprep.subr.mxu0 0.0
  %65 = vmatpush1.msra.mxu0 %v25
  %66 = vmatprep.subr.mxu0 0.0
  %67 = vmatpush1.msra.mxu0 %v24
  %68 = vmatprep.subr.mxu0 0.0
  %69 = vmatpush1.msra.mxu0 %v23
  %70 = vmatprep.subr.mxu0 0.0
  %71 = vmatpush1.msra.mxu0 %v22
  %72 = vmatprep.subr.mxu0 0.0
  %73 = vmatpush2.msra.mxu0 0.0
  %74 = vmatprep.subr.mxu0 0.0
  %75 = vmatpush2.msra.mxu0 0.0
  %76 = vmatprep.subr.mxu0 0.0
  %77 = vmatpush2.msra.mxu0 0.0
  %78 = vmatprep.subr.mxu0 0.0
  %79 = vmatpush2.msra.mxu0 0.0
  %80 = vmatprep.subr.mxu0 0.0
  %81 = vmatpush2.msra.mxu0 0.0
  %82 = vmatprep.subr.mxu0 0.0
  %83 = vmatpush2.msra.mxu0 0.0
  %84 = vmatprep.subr.mxu0 0.0
  %85 = vmatpush2.msra.mxu0 0.0
  %86 = vmatprep.subr.mxu0 0.0
  %87 = vmatpush2.msra.mxu0 0.0
  %88 = vmatprep.subr.mxu0 0.0
  %89 = vmatpush2.msra.mxu0 0.0
  %90 = vmatprep.subr.mxu0 0.0
  %91 = vmatpush2.msra.mxu0 0.0
  %92 = vmatprep.subr.mxu0 0.0
  %93 = vmatpush2.msra.mxu0 0.0
  %94 = vmatprep.subr.mxu0 0.0
  %95 = vmatpush2.msra.mxu0 0.0
  %96 = vmatprep.subr.mxu0 0.0
  %97 = vmatpush2.msra.mxu0 0.0
  %98 = vmatprep.subr.mxu0 0.0
  %99 = vmatpush2.msra.mxu0 0.0
  %100 = vmatprep.subr.mxu0 0.0
  %101 = vmatpush2.msra.mxu0 0.0
  %102 = vmatprep.subr.mxu0 0.0
  %103 = vmatpush2.msra.mxu0 0.0
  %104 = vmatprep.mubr.f32.mxu0 0.0
  %105 = vmatmul.mubr.f32.gmra.mxu0 %v38
  %v106 = vpop.f32.mrf.mxu0
  %v107 = vadd.f32 0.0, %v106
  %v108 = vpop.f32.mrf.mxu0
  %109 = vdwg.mxu0
  %v110 = vadd.f32 %v39, %v107
  %v111 = vtanh.pop %v110
  %112 = vst [vmem:[%s3] sm:$0xff] %v111
  %s113 = scalar_lea.vmem %s0, 8
  %v114 = vld [vmem:[%s113] sm:$0xff]
  %115 = vmatprep.subr.mxu0 0.0
  %116 = vmatpush1.msra.mxu0 %v37
  %117 = vmatprep.subr.mxu0 0.0
  %118 = vmatpush1.msra.mxu0 %v36
  %119 = vmatprep.subr.mxu0 0.0
  %120 = vmatpush1.msra.mxu0 %v35
  %121 = vmatprep.subr.mxu0 0.0
  %122 = vmatpush1.msra.mxu0 %v34
  %123 = vmatprep.subr.mxu0 0.0
  %124 = vmatpush1.msra.mxu0 %v33
  %125 = vmatprep.subr.mxu0 0.0
  %126 = vmatpush1.msra.mxu0 %v32
  %127 = vmatprep.subr.mxu0 0.0
  %128 = vmatpush1.msra.mxu0 %v31
  %129 = vmatprep.subr.mxu0 0.0
  %130 = vmatpush1.msra.mxu0 %v30
  %131 = vmatprep.subr.mxu0 0.0
  %132 = vmatpush1.msra.mxu0 %v29
  %133 = vmatprep.subr.mxu0 0.0
  %134 = vmatpush1.msra.mxu0 %v28
  %135 = vmatprep.subr.mxu0 0.0
  %136 = vmatpush1.msra.mxu0 %v27
  %137 = vmatprep.subr.mxu0 0.0
  %138 = vmatpush1.msra.mxu0 %v26
  %139 = vmatprep.subr.mxu0 0.0
  %140 = vmatpush1.msra.mxu0 %v25
  %141 = vmatprep.subr.mxu0 0.0
  %142 = vmatpush1.msra.mxu0 %v24
  %143 = vmatprep.subr.mxu0 0.0
  %144 = vmatpush1.msra.mxu0 %v23
  %145 = vmatprep.subr.mxu0 0.0
  %146 = vmatpush1.msra.mxu0 %v22
  %147 = vmatprep.subr.mxu0 0.0
  %148 = vmatpush2.msra.mxu0 0.0
  %149 = vmatprep.subr.mxu0 0.0
  %150 = vmatpush2.msra.mxu0 0.0
  %151 = vmatprep.subr.mxu0 0.0
  %152 = vmatpush2.msra.mxu0 0.0
  %153 = vmatprep.subr.mxu0 0.0
  %154 = vmatpush2.msra.mxu0 0.0
  %155 = vmatprep.subr.mxu0 0.0
  %156 = vmatpush2.msra.mxu0 0.0
  %157 = vmatprep.subr.mxu0 0.0
  %158 = vmatpush2.msra.mxu0 0.0
  %159 = vmatprep.subr.mxu0 0.0
  %160 = vmatpush2.msra.mxu0 0.0
  %161 = vmatprep.subr.mxu0 0.0
  %162 = vmatpush2.msra.mxu0 0.0
  %163 = vmatprep.subr.mxu0 0.0
  %164 = vmatpush2.msra.mxu0 0.0
  %165 = vmatprep.subr.mxu0 0.0
  %166 = vmatpush2.msra.mxu0 0.0
  %167 = vmatprep.subr.mxu0 0.0
  %168 = vmatpush2.msra.mxu0 0.0
  %169 = vmatprep.subr.mxu0 0.0
  %170 = vmatpush2.msra.mxu0 0.0
  %171 = vmatprep.subr.mxu0 0.0
  %172 = vmatpush2.msra.mxu0 0.0
  %173 = vmatprep.subr.mxu0 0.0
  %174 = vmatpush2.msra.mxu0 0.0
  %175 = vmatprep.subr.mxu0 0.0
  %176 = vmatpush2.msra.mxu0 0.0
  %177 = vmatprep.subr.mxu0 0.0
  %178 = vmatpush2.msra.mxu0 0.0
  %179 = vmatprep.mubr.f32.mxu0 0.0
  %180 = vmatmul.mubr.f32.gmra.mxu0 %v111
  %v181 = vpop.f32.mrf.mxu0
  %v182 = vadd.f32 0.0, %v181
  %v183 = vpop.f32.mrf.mxu0
  %184 = vdwg.mxu0
  %v185 = vadd.f32 %v114, %v182
  %v186 = vtanh.pop %v185
  %s187 = scalar_lea.vmem %s3, 8
  %188 = vst [vmem:[%s187] sm:$0xff] %v186
  %s189 = scalar_lea.vmem %s0, 16
  %v190 = vld [vmem:[%s189] sm:$0xff]
  %191 = vmatprep.subr.mxu0 0.0
  %192 = vmatpush1.msra.mxu0 %v37
  %193 = vmatprep.subr.mxu0 0.0
  %194 = vmatpush1.msra.mxu0 %v36
  %195 = vmatprep.subr.mxu0 0.0
  %196 = vmatpush1.msra.mxu0 %v35
  %197 = vmatprep.subr.mxu0 0.0
  %198 = vmatpush1.msra.mxu0 %v34
  %199 = vmatprep.subr.mxu0 0.0
  %200 = vmatpush1.msra.mxu0 %v33
  %201 = vmatprep.subr.mxu0 0.0
  %202 = vmatpush1.msra.mxu0 %v32
  %203 = vmatprep.subr.mxu0 0.0
  %204 = vmatpush1.msra.mxu0 %v31
  %205 = vmatprep.subr.mxu0 0.0
  %206 = vmatpush1.msra.mxu0 %v30
  %207 = vmatprep.subr.mxu0 0.0
  %208 = vmatpush1.msra.mxu0 %v29
  %209 = vmatprep.subr.mxu0 0.0
  %210 = vmatpush1.msra.mxu0 %v28
  %211 = vmatprep.subr.mxu0 0.0
  %212 = vmatpush1.msra.mxu0 %v27
  %213 = vmatprep.subr.mxu0 0.0
  %214 = vmatpush1.msra.mxu0 %v26
  %215 = vmatprep.subr.mxu0 0.0
  %216 = vmatpush1.msra.mxu0 %v25
  %217 = vmatprep.subr.mxu0 0.0
  %218 = vmatpush1.msra.mxu0 %v24
  %219 = vmatprep.subr.mxu0 0.0
  %220 = vmatpush1.msra.mxu0 %v23
  %221 = vmatprep.subr.mxu0 0.0
  %222 = vmatpush1.msra.mxu0 %v22
  %223 = vmatprep.subr.mxu0 0.0
  %224 = vmatpush2.msra.mxu0 0.0
  %225 = vmatprep.subr.mxu0 0.0
  %226 = vmatpush2.msra.mxu0 0.0
  %227 = vmatprep.subr.mxu0 0.0
  %228 = vmatpush2.msra.mxu0 0.0
  %229 = vmatprep.subr.mxu0 0.0
  %230 = vmatpush2.msra.mxu0 0.0
  %231 = vmatprep.subr.mxu0 0.0
  %232 = vmatpush2.msra.mxu0 0.0
  %233 = vmatprep.subr.mxu0 0.0
  %234 = vmatpush2.msra.mxu0 0.0
  %235 = vmatprep.subr.mxu0 0.0
  %236 = vmatpush2.msra.mxu0 0.0
  %237 = vmatprep.subr.mxu0 0.0
  %238 = vmatpush2.msra.mxu0 0.0
  %239 = vmatprep.subr.mxu0 0.0
  %240 = vmatpush2.msra.mxu0 0.0
  %241 = vmatprep.subr.mxu0 0.0
  %242 = vmatpush2.msra.mxu0 0.0
  %243 = vmatprep.subr.mxu0 0.0
  %244 = vmatpush2.msra.mxu0 0.0
  %245 = vmatprep.subr.mxu0 0.0
  %246 = vmatpush2.msra.mxu0 0.0
  %247 = vmatprep.subr.mxu0 0.0
  %248 = vmatpush2.msra.mxu0 0.0
  %249 = vmatprep.subr.mxu0 0.0
  %250 = vmatpush2.msra.mxu0 0.0
  %251 = vmatprep.subr.mxu0 0.0
  %252 = vmatpush2.msra.mxu0 0.0
  %253 = vmatprep.subr.mxu0 0.0
  %254 = vmatpush2.msra.mxu0 0.0
  %255 = vmatprep.mubr.f32.mxu0 0.0
  %256 = vmatmul.mubr.f32.gmra.mxu0 %v186
  %v257 = vpop.f32.mrf.mxu0
  %v258 = vadd.f32 0.0, %v257
  %v259 = vpop.f32.mrf.mxu0
  %260 = vdwg.mxu0
  %v261 = vadd.f32 %v190, %v258
  %v262 = vtanh.pop %v261
  %s263 = scalar_lea.vmem %s3, 16
  %264 = vst [vmem:[%s263] sm:$0xff] %v262
  %s265 = scalar_lea.vmem %s0, 24
  %v266 = vld [vmem:[%s265] sm:$0xff]
  %267 = vmatprep.subr.mxu0 0.0
  %268 = vmatpush1.msra.mxu0 %v37
  %269 = vmatprep.subr.mxu0 0.0
  %270 = vmatpush1.msra.mxu0 %v36
  %271 = vmatprep.subr.mxu0 0.0
  %272 = vmatpush1.msra.mxu0 %v35
  %273 = vmatprep.subr.mxu0 0.0
  %274 = vmatpush1.msra.mxu0 %v34
  %275 = vmatprep.subr.mxu0 0.0
  %276 = vmatpush1.msra.mxu0 %v33
  %277 = vmatprep.subr.mxu0 0.0
  %278 = vmatpush1.msra.mxu0 %v32
  %279 = vmatprep.subr.mxu0 0.0
  %280 = vmatpush1.msra.mxu0 %v31
  %281 = vmatprep.subr.mxu0 0.0
  %282 = vmatpush1.msra.mxu0 %v30
  %283 = vmatprep.subr.mxu0 0.0
  %284 = vmatpush1.msra.mxu0 %v29
  %285 = vmatprep.subr.mxu0 0.0
  %286 = vmatpush1.msra.mxu0 %v28
  %287 = vmatprep.subr.mxu0 0.0
  %288 = vmatpush1.msra.mxu0 %v27
  %289 = vmatprep.subr.mxu0 0.0
  %290 = vmatpush1.msra.mxu0 %v26
  %291 = vmatprep.subr.mxu0 0.0
  %292 = vmatpush1.msra.mxu0 %v25
  %293 = vmatprep.subr.mxu0 0.0
  %294 = vmatpush1.msra.mxu0 %v24
  %295 = vmatprep.subr.mxu0 0.0
  %296 = vmatpush1.msra.mxu0 %v23
  %297 = vmatprep.subr.mxu0 0.0
  %298 = vmatpush1.msra.mxu0 %v22
  %299 = vmatprep.subr.mxu0 0.0
  %300 = vmatpush2.msra.mxu0 0.0
  %301 = vmatprep.subr.mxu0 0.0
  %302 = vmatpush2.msra.mxu0 0.0
  %303 = vmatprep.subr.mxu0 0.0
  %304 = vmatpush2.msra.mxu0 0.0
  %305 = vmatprep.subr.mxu0 0.0
  %306 = vmatpush2.msra.mxu0 0.0
  %307 = vmatprep.subr.mxu0 0.0
  %308 = vmatpush2.msra.mxu0 0.0
  %309 = vmatprep.subr.mxu0 0.0
  %310 = vmatpush2.msra.mxu0 0.0
  %311 = vmatprep.subr.mxu0 0.0
  %312 = vmatpush2.msra.mxu0 0.0
  %313 = vmatprep.subr.mxu0 0.0
  %314 = vmatpush2.msra.mxu0 0.0
  %315 = vmatprep.subr.mxu0 0.0
  %316 = vmatpush2.msra.mxu0 0.0
  %317 = vmatprep.subr.mxu0 0.0
  %318 = vmatpush2.msra.mxu0 0.0
  %319 = vmatprep.subr.mxu0 0.0
  %320 = vmatpush2.msra.mxu0 0.0
  %321 = vmatprep.subr.mxu0 0.0
  %322 = vmatpush2.msra.mxu0 0.0
  %323 = vmatprep.subr.mxu0 0.0
  %324 = vmatpush2.msra.mxu0 0.0
  %325 = vmatprep.subr.mxu0 0.0
  %326 = vmatpush2.msra.mxu0 0.0
  %327 = vmatprep.subr.mxu0 0.0
  %328 = vmatpush2.msra.mxu0 0.0
  %329 = vmatprep.subr.mxu0 0.0
  %330 = vmatpush2.msra.mxu0 0.0
  %331 = vmatprep.mubr.f32.mxu0 0.0
  %332 = vmatmul.mubr.f32.gmra.mxu0 %v262
  %v333 = vpop.f32.mrf.mxu0
  %v334 = vadd.f32 0.0, %v333
  %v335 = vpop.f32.mrf.mxu0
  %336 = vdwg.mxu0
  %v337 = vadd.f32 %v266, %v334
  %v338 = vtanh.pop %v337
  %s339 = scalar_lea.vmem %s3, 24
  %340 = vst [vmem:[%s339] sm:$0xff] %v338
  %s341 = scalar_lea.vmem %s0, 32
  %v342 = vld [vmem:[%s341] sm:$0xff]
  %343 = vmatprep.subr.mxu0 0.0
  %344 = vmatpush1.msra.mxu0 %v37
  %345 = vmatprep.subr.mxu0 0.0
  %346 = vmatpush1.msra.mxu0 %v36
  %347 = vmatprep.subr.mxu0 0.0
  %348 = vmatpush1.msra.mxu0 %v35
  %349 = vmatprep.subr.mxu0 0.0
  %350 = vmatpush1.msra.mxu0 %v34
  %351 = vmatprep.subr.mxu0 0.0
  %352 = vmatpush1.msra.mxu0 %v33
  %353 = vmatprep.subr.mxu0 0.0
  %354 = vmatpush1.msra.mxu0 %v32
  %355 = vmatprep.subr.mxu0 0.0
  %356 = vmatpush1.msra.mxu0 %v31
  %357 = vmatprep.subr.mxu0 0.0
  %358 = vmatpush1.msra.mxu0 %v30
  %359 = vmatprep.subr.mxu0 0.0
  %360 = vmatpush1.msra.mxu0 %v29
  %361 = vmatprep.subr.mxu0 0.0
  %362 = vmatpush1.msra.mxu0 %v28
  %363 = vmatprep.subr.mxu0 0.0
  %364 = vmatpush1.msra.mxu0 %v27
  %365 = vmatprep.subr.mxu0 0.0
  %366 = vmatpush1.msra.mxu0 %v26
  %367 = vmatprep.subr.mxu0 0.0
  %368 = vmatpush1.msra.mxu0 %v25
  %369 = vmatprep.subr.mxu0 0.0
  %370 = vmatpush1.msra.mxu0 %v24
  %371 = vmatprep.subr.mxu0 0.0
  %372 = vmatpush1.msra.mxu0 %v23
  %373 = vmatprep.subr.mxu0 0.0
  %374 = vmatpush1.msra.mxu0 %v22
  %375 = vmatprep.subr.mxu0 0.0
  %376 = vmatpush2.msra.mxu0 0.0
  %377 = vmatprep.subr.mxu0 0.0
  %378 = vmatpush2.msra.mxu0 0.0
  %379 = vmatprep.subr.mxu0 0.0
  %380 = vmatpush2.msra.mxu0 0.0
  %381 = vmatprep.subr.mxu0 0.0
  %382 = vmatpush2.msra.mxu0 0.0
  %383 = vmatprep.subr.mxu0 0.0
  %384 = vmatpush2.msra.mxu0 0.0
  %385 = vmatprep.subr.mxu0 0.0
  %386 = vmatpush2.msra.mxu0 0.0
  %387 = vmatprep.subr.mxu0 0.0
  %388 = vmatpush2.msra.mxu0 0.0
  %389 = vmatprep.subr.mxu0 0.0
  %390 = vmatpush2.msra.mxu0 0.0
  %391 = vmatprep.subr.mxu0 0.0
  %392 = vmatpush2.msra.mxu0 0.0
  %393 = vmatprep.subr.mxu0 0.0
  %394 = vmatpush2.msra.mxu0 0.0
  %395 = vmatprep.subr.mxu0 0.0
  %396 = vmatpush2.msra.mxu0 0.0
  %397 = vmatprep.subr.mxu0 0.0
  %398 = vmatpush2.msra.mxu0 0.0
  %399 = vmatprep.subr.mxu0 0.0
  %400 = vmatpush2.msra.mxu0 0.0
  %401 = vmatprep.subr.mxu0 0.0
  %402 = vmatpush2.msra.mxu0 0.0
  %403 = vmatprep.subr.mxu0 0.0
  %404 = vmatpush2.msra.mxu0 0.0
  %405 = vmatprep.subr.mxu0 0.0
  %406 = vmatpush2.msra.mxu0 0.0
  %407 = vmatprep.mubr.f32.mxu0 0.0
  %408 = vmatmul.mubr.f32.gmra.mxu0 %v338
  %v409 = vpop.f32.mrf.mxu0
  %v410 = vadd.f32 0.0, %v409
  %v411 = vpop.f32.mrf.mxu0
  %412 = vdwg.mxu0
  %v413 = vadd.f32 %v342, %v410
  %v414 = vtanh.pop %v413
  %s415 = scalar_lea.vmem %s3, 32
  %416 = vst [vmem:[%s415] sm:$0xff] %v414
  %s417 = scalar_lea.vmem %s0, 40
  %v418 = vld [vmem:[%s417] sm:$0xff]
  %419 = vmatprep.subr.mxu0 0.0
  %420 = vmatpush1.msra.mxu0 %v37
  %421 = vmatprep.subr.mxu0 0.0
  %422 = vmatpush1.msra.mxu0 %v36
  %423 = vmatprep.subr.mxu0 0.0
  %424 = vmatpush1.msra.mxu0 %v35
  %425 = vmatprep.subr.mxu0 0.0
  %426 = vmatpush1.msra.mxu0 %v34
  %427 = vmatprep.subr.mxu0 0.0
  %428 = vmatpush1.msra.mxu0 %v33
  %429 = vmatprep.subr.mxu0 0.0
  %430 = vmatpush1.msra.mxu0 %v32
  %431 = vmatprep.subr.mxu0 0.0
  %432 = vmatpush1.msra.mxu0 %v31
  %433 = vmatprep.subr.mxu0 0.0
  %434 = vmatpush1.msra.mxu0 %v30
  %435 = vmatprep.subr.mxu0 0.0
  %436 = vmatpush1.msra.mxu0 %v29
  %437 = vmatprep.subr.mxu0 0.0
  %438 = vmatpush1.msra.mxu0 %v28
  %439 = vmatprep.subr.mxu0 0.0
  %440 = vmatpush1.msra.mxu0 %v27
  %441 = vmatprep.subr.mxu0 0.0
  %442 = vmatpush1.msra.mxu0 %v26
  %443 = vmatprep.subr.mxu0 0.0
  %444 = vmatpush1.msra.mxu0 %v25
  %445 = vmatprep.subr.mxu0 0.0
  %446 = vmatpush1.msra.mxu0 %v24
  %447 = vmatprep.subr.mxu0 0.0
  %448 = vmatpush1.msra.mxu0 %v23
  %449 = vmatprep.subr.mxu0 0.0
  %450 = vmatpush1.msra.mxu0 %v22
  %451 = vmatprep.subr.mxu0 0.0
  %452 = vmatpush2.msra.mxu0 0.0
  %453 = vmatprep.subr.mxu0 0.0
  %454 = vmatpush2.msra.mxu0 0.0
  %455 = vmatprep.subr.mxu0 0.0
  %456 = vmatpush2.msra.mxu0 0.0
  %457 = vmatprep.subr.mxu0 0.0
  %458 = vmatpush2.msra.mxu0 0.0
  %459 = vmatprep.subr.mxu0 0.0
  %460 = vmatpush2.msra.mxu0 0.0
  %461 = vmatprep.subr.mxu0 0.0
  %462 = vmatpush2.msra.mxu0 0.0
  %463 = vmatprep.subr.mxu0 0.0
  %464 = vmatpush2.msra.mxu0 0.0
  %465 = vmatprep.subr.mxu0 0.0
  %466 = vmatpush2.msra.mxu0 0.0
  %467 = vmatprep.subr.mxu0 0.0
  %468 = vmatpush2.msra.mxu0 0.0
  %469 = vmatprep.subr.mxu0 0.0
  %470 = vmatpush2.msra.mxu0 0.0
  %471 = vmatprep.subr.mxu0 0.0
  %472 = vmatpush2.msra.mxu0 0.0
  %473 = vmatprep.subr.mxu0 0.0
  %474 = vmatpush2.msra.mxu0 0.0
  %475 = vmatprep.subr.mxu0 0.0
  %476 = vmatpush2.msra.mxu0 0.0
  %477 = vmatprep.subr.mxu0 0.0
  %478 = vmatpush2.msra.mxu0 0.0
  %479 = vmatprep.subr.mxu0 0.0
  %480 = vmatpush2.msra.mxu0 0.0
  %481 = vmatprep.subr.mxu0 0.0
  %482 = vmatpush2.msra.mxu0 0.0
  %483 = vmatprep.mubr.f32.mxu0 0.0
  %484 = vmatmul.mubr.f32.gmra.mxu0 %v414
  %v485 = vpop.f32.mrf.mxu0
  %v486 = vadd.f32 0.0, %v485
  %v487 = vpop.f32.mrf.mxu0
  %488 = vdwg.mxu0
  %v489 = vadd.f32 %v418, %v486
  %v490 = vtanh.pop %v489
  %s491 = scalar_lea.vmem %s3, 40
  %492 = vst [vmem:[%s491] sm:$0xff] %v490
  %s493 = scalar_lea.vmem %s0, 48
  %v494 = vld [vmem:[%s493] sm:$0xff]
  %495 = vmatprep.subr.mxu0 0.0
  %496 = vmatpush1.msra.mxu0 %v37
  %497 = vmatprep.subr.mxu0 0.0
  %498 = vmatpush1.msra.mxu0 %v36
  %499 = vmatprep.subr.mxu0 0.0
  %500 = vmatpush1.msra.mxu0 %v35
  %501 = vmatprep.subr.mxu0 0.0
  %502 = vmatpush1.msra.mxu0 %v34
  %503 = vmatprep.subr.mxu0 0.0
  %504 = vmatpush1.msra.mxu0 %v33
  %505 = vmatprep.subr.mxu0 0.0
  %506 = vmatpush1.msra.mxu0 %v32
  %507 = vmatprep.subr.mxu0 0.0
  %508 = vmatpush1.msra.mxu0 %v31
  %509 = vmatprep.subr.mxu0 0.0
  %510 = vmatpush1.msra.mxu0 %v30
  %511 = vmatprep.subr.mxu0 0.0
  %512 = vmatpush1.msra.mxu0 %v29
  %513 = vmatprep.subr.mxu0 0.0
  %514 = vmatpush1.msra.mxu0 %v28
  %515 = vmatprep.subr.mxu0 0.0
  %516 = vmatpush1.msra.mxu0 %v27
  %517 = vmatprep.subr.mxu0 0.0
  %518 = vmatpush1.msra.mxu0 %v26
  %519 = vmatprep.subr.mxu0 0.0
  %520 = vmatpush1.msra.mxu0 %v25
  %521 = vmatprep.subr.mxu0 0.0
  %522 = vmatpush1.msra.mxu0 %v24
  %523 = vmatprep.subr.mxu0 0.0
  %524 = vmatpush1.msra.mxu0 %v23
  %525 = vmatprep.subr.mxu0 0.0
  %526 = vmatpush1.msra.mxu0 %v22
  %527 = vmatprep.subr.mxu0 0.0
  %528 = vmatpush2.msra.mxu0 0.0
  %529 = vmatprep.subr.mxu0 0.0
  %530 = vmatpush2.msra.mxu0 0.0
  %531 = vmatprep.subr.mxu0 0.0
  %532 = vmatpush2.msra.mxu0 0.0
  %533 = vmatprep.subr.mxu0 0.0
  %534 = vmatpush2.msra.mxu0 0.0
  %535 = vmatprep.subr.mxu0 0.0
  %536 = vmatpush2.msra.mxu0 0.0
  %537 = vmatprep.subr.mxu0 0.0
  %538 = vmatpush2.msra.mxu0 0.0
  %539 = vmatprep.subr.mxu0 0.0
  %540 = vmatpush2.msra.mxu0 0.0
  %541 = vmatprep.subr.mxu0 0.0
  %542 = vmatpush2.msra.mxu0 0.0
  %543 = vmatprep.subr.mxu0 0.0
  %544 = vmatpush2.msra.mxu0 0.0
  %545 = vmatprep.subr.mxu0 0.0
  %546 = vmatpush2.msra.mxu0 0.0
  %547 = vmatprep.subr.mxu0 0.0
  %548 = vmatpush2.msra.mxu0 0.0
  %549 = vmatprep.subr.mxu0 0.0
  %550 = vmatpush2.msra.mxu0 0.0
  %551 = vmatprep.subr.mxu0 0.0
  %552 = vmatpush2.msra.mxu0 0.0
  %553 = vmatprep.subr.mxu0 0.0
  %554 = vmatpush2.msra.mxu0 0.0
  %555 = vmatprep.subr.mxu0 0.0
  %556 = vmatpush2.msra.mxu0 0.0
  %557 = vmatprep.subr.mxu0 0.0
  %558 = vmatpush2.msra.mxu0 0.0
  %559 = vmatprep.mubr.f32.mxu0 0.0
  %560 = vmatmul.mubr.f32.gmra.mxu0 %v490
  %v561 = vpop.f32.mrf.mxu0
  %v562 = vadd.f32 0.0, %v561
  %v563 = vpop.f32.mrf.mxu0
  %564 = vdwg.mxu0
  %v565 = vadd.f32 %v494, %v562
  %v566 = vtanh.pop %v565
  %s567 = scalar_lea.vmem %s3, 48
  %568 = vst [vmem:[%s567] sm:$0xff] %v566
  %s569 = scalar_lea.vmem %s0, 56
  %v570 = vld [vmem:[%s569] sm:$0xff]
  %571 = vmatprep.subr.mxu0 0.0
  %572 = vmatpush1.msra.mxu0 %v37
  %573 = vmatprep.subr.mxu0 0.0
  %574 = vmatpush1.msra.mxu0 %v36
  %575 = vmatprep.subr.mxu0 0.0
  %576 = vmatpush1.msra.mxu0 %v35
  %577 = vmatprep.subr.mxu0 0.0
  %578 = vmatpush1.msra.mxu0 %v34
  %579 = vmatprep.subr.mxu0 0.0
  %580 = vmatpush1.msra.mxu0 %v33
  %581 = vmatprep.subr.mxu0 0.0
  %582 = vmatpush1.msra.mxu0 %v32
  %583 = vmatprep.subr.mxu0 0.0
  %584 = vmatpush1.msra.mxu0 %v31
  %585 = vmatprep.subr.mxu0 0.0
  %586 = vmatpush1.msra.mxu0 %v30
  %587 = vmatprep.subr.mxu0 0.0
  %588 = vmatpush1.msra.mxu0 %v29
  %589 = vmatprep.subr.mxu0 0.0
  %590 = vmatpush1.msra.mxu0 %v28
  %591 = vmatprep.subr.mxu0 0.0
  %592 = vmatpush1.msra.mxu0 %v27
  %593 = vmatprep.subr.mxu0 0.0
  %594 = vmatpush1.msra.mxu0 %v26
  %595 = vmatprep.subr.mxu0 0.0
  %596 = vmatpush1.msra.mxu0 %v25
  %597 = vmatprep.subr.mxu0 0.0
  %598 = vmatpush1.msra.mxu0 %v24
  %599 = vmatprep.subr.mxu0 0.0
  %600 = vmatpush1.msra.mxu0 %v23
  %601 = vmatprep.subr.mxu0 0.0
  %602 = vmatpush1.msra.mxu0 %v22
  %603 = vmatprep.subr.mxu0 0.0
  %604 = vmatpush2.msra.mxu0 0.0
  %605 = vmatprep.subr.mxu0 0.0
  %606 = vmatpush2.msra.mxu0 0.0
  %607 = vmatprep.subr.mxu0 0.0
  %608 = vmatpush2.msra.mxu0 0.0
  %609 = vmatprep.subr.mxu0 0.0
  %610 = vmatpush2.msra.mxu0 0.0
  %611 = vmatprep.subr.mxu0 0.0
  %612 = vmatpush2.msra.mxu0 0.0
  %613 = vmatprep.subr.mxu0 0.0
  %614 = vmatpush2.msra.mxu0 0.0
  %615 = vmatprep.subr.mxu0 0.0
  %616 = vmatpush2.msra.mxu0 0.0
  %617 = vmatprep.subr.mxu0 0.0
  %618 = vmatpush2.msra.mxu0 0.0
  %619 = vmatprep.subr.mxu0 0.0
  %620 = vmatpush2.msra.mxu0 0.0
  %621 = vmatprep.subr.mxu0 0.0
  %622 = vmatpush2.msra.mxu0 0.0
  %623 = vmatprep.subr.mxu0 0.0
  %624 = vmatpush2.msra.mxu0 0.0
  %625 = vmatprep.subr.mxu0 0.0
  %626 = vmatpush2.msra.mxu0 0.0
  %627 = vmatprep.subr.mxu0 0.0
  %628 = vmatpush2.msra.mxu0 0.0
  %629 = vmatprep.subr.mxu0 0.0
  %630 = vmatpush2.msra.mxu0 0.0
  %631 = vmatprep.subr.mxu0 0.0
  %632 = vmatpush2.msra.mxu0 0.0
  %633 = vmatprep.subr.mxu0 0.0
  %634 = vmatpush2.msra.mxu0 0.0
  %635 = vmatprep.mubr.f32.mxu0 0.0
  %636 = vmatmul.mubr.f32.gmra.mxu0 %v566
  %v637 = vpop.f32.mrf.mxu0
  %v638 = vadd.f32 0.0, %v637
  %v639 = vpop.f32.mrf.mxu0
  %640 = vdwg.mxu0
  %v641 = vadd.f32 %v570, %v638
  %v642 = vtanh.pop %v641
  %s643 = scalar_lea.vmem %s3, 56
  %644 = vst [vmem:[%s643] sm:$0xff] %v642
  %645 = vst [vmem:[%s4] sm:$0xff] %v642
  // Predicated region
  $region18: #{rnn_forward.2} parent=0 // pred_check
    _
  $region19: #{rnn_forward.2} parent=0 // pred_check_branch
    %647 = sbr.rel (0) target = $region21
  $region20: #{rnn_forward.2} parent=0 // pred_region
    _
  $region21: #{rnn_forward.2} parent=0 // pred_fallthru
    _
  // Predicated region
  $region22: #{rnn_forward.2} parent=0 // pred_check
    _
  $region23: #{rnn_forward.2} parent=0 // pred_check_branch
    %649 = sbr.rel (0) target = $region25
  $region24: #{rnn_forward.2} parent=0 // pred_region
    _
  $region25: #{rnn_forward.2} parent=0 // pred_fallthru
    _
  // Predicated region
  $region26: #{rnn_forward.2} parent=0 // pred_check
    _
  $region27: #{rnn_forward.2} parent=0 // pred_check_branch
    %651 = sbr.rel (0) target = $region29
  $region28: #{rnn_forward.2} parent=0 // pred_region
    _
  $region29: #{rnn_forward.2} parent=0 // pred_fallthru
    _
  // Predicated region
  $region30: #{rnn_forward.2} parent=0 // pred_check
    _
  $region31: #{rnn_forward.2} parent=0 // pred_check_branch
    %653 = sbr.rel (0) target = $region33
  $region32: #{rnn_forward.2} parent=0 // pred_region
    _
  $region33: #{rnn_forward.2} parent=0 // pred_fallthru
    _

</llo_original>
